<compile_context>
chip_gen: v5e
topology: v5e:2x2
jax: 0.10.0
libtpu: 0.0.40
codegen_flags: <defaults>
</compile_context>

<pallas_src>
import functools

import jax
import jax.numpy as jnp
from jax import lax
from jax.experimental import pallas as pl
from jax.experimental.pallas import tpu as pltpu


def _round_up(x: int, m: int) -> int:
    return (x + m - 1) // m * m


def _tpu_defaults():
    """Per-generation tile / VMEM defaults."""
    kind = ""
    try:
        kind = jax.devices()[0].device_kind.lower()
    except Exception:
        pass
    if "v5e" in kind or "v5 lite" in kind or "v5lite" in kind:
        # 128 MiB VMEM, 16 MiB scoped default, 4x128x128 MXU.
        return dict(tm=512, tff=512, align=128, cores=1,
                    vmem_cap=96 << 20, resident_budget=48 << 20)
    if "v6" in kind:
        # 128 MiB VMEM, 2x256x256 MXU, ridge ~670 FLOP/B -> big row tiles.
        return dict(tm=1024, tff=512, align=256, cores=1,
                    vmem_cap=100 << 20, resident_budget=48 << 20)
    if "v7" in kind:
        # 64 MiB VMEM per TC, 2 TCs/chip, 3.2 TB/s HBM -> tm ~512 suffices.
        return dict(tm=512, tff=512, align=256, cores=2,
                    vmem_cap=56 << 20, resident_budget=24 << 20)
    # Unknown / older: conservative.
    return dict(tm=256, tff=512, align=128, cores=1,
                vmem_cap=48 << 20, resident_budget=24 << 20)


# --------------------------------------------------------------------------- #
# Kernels
# --------------------------------------------------------------------------- #
def _ffn_kernel_fused(x_ref, w1_ref, b1_ref, w2_ref, b2_ref, o_ref):
    """Fast path: full (padded) W1/W2 resident in VMEM, grid = row tiles only."""
    h = jnp.dot(x_ref[...], w1_ref[...], preferred_element_type=jnp.float32)
    h = jnp.maximum(h + b1_ref[...], 0.0)
    y = jnp.dot(h.astype(w2_ref.dtype), w2_ref[...],
                preferred_element_type=jnp.float32)
    o_ref[...] = (y + b2_ref[...]).astype(o_ref.dtype)


def _ffn_kernel_kacc_f32(x_ref, w1_ref, b1_ref, w2_ref, b2_ref, o_ref):
    """Streaming path, f32 output: accumulate directly into the VMEM-resident
    output block (constant block index along k) -- no scratch accumulator."""
    k = pl.program_id(1)

    @pl.when(k == 0)
    def _():
        o_ref[...] = jnp.broadcast_to(b2_ref[...], o_ref.shape).astype(o_ref.dtype)

    h = jnp.dot(x_ref[...], w1_ref[...], preferred_element_type=jnp.float32)
    h = jnp.maximum(h + b1_ref[...], 0.0)
    o_ref[...] += jnp.dot(h.astype(w2_ref.dtype), w2_ref[...],
                          preferred_element_type=jnp.float32)


def _ffn_kernel_kacc_scratch(x_ref, w1_ref, b1_ref, w2_ref, b2_ref, o_ref, acc_ref):
    """Streaming path, non-f32 output: f32 VMEM scratch accumulator."""
    k = pl.program_id(1)

    @pl.when(k == 0)
    def _():
        acc_ref[...] = jnp.zeros_like(acc_ref)

    h = jnp.dot(x_ref[...], w1_ref[...], preferred_element_type=jnp.float32)
    h = jnp.maximum(h + b1_ref[...], 0.0)
    acc_ref[...] += jnp.dot(h.astype(w2_ref.dtype), w2_ref[...],
                            preferred_element_type=jnp.float32)

    @pl.when(k == pl.num_programs(1) - 1)
    def _():
        o_ref[...] = (acc_ref[...] + b2_ref[...]).astype(o_ref.dtype)


# --------------------------------------------------------------------------- #
# Wrapper
# --------------------------------------------------------------------------- #
def ffn_prepare(w1, b1, w2, b2, *, compute_dtype=jnp.bfloat16, align=None):
    """Transpose / cast / zero-pad the FFN parameters ONCE (hoist out of hot path).

    PyTorch nn.Linear layout:  w1: [d_ff, d_model], b1: [d_ff],
                               w2: [d_model, d_ff], b2: [d_model].
    Returns (w1_t, b1_2d, w2_t, b2_2d):
      w1_t: (d_model_p, d_ff_p)  compute_dtype
      b1_2d: (1, d_ff_p)         f32
      w2_t: (d_ff_p, d_model_p)  compute_dtype
      b2_2d: (1, d_model_p)      f32
    """
    if align is None:
        align = _tpu_defaults()["align"]
    d_ff, d_model = w1.shape
    d_model_p = _round_up(d_model, align)
    d_ff_p = _round_up(d_ff, align)
    dt = compute_dtype

    w1_t = jnp.pad(w1.T.astype(dt),
                   ((0, d_model_p - d_model), (0, d_ff_p - d_ff)))
    w2_t = jnp.pad(w2.T.astype(dt),
                   ((0, d_ff_p - d_ff), (0, d_model_p - d_model)))
    b1_2d = jnp.pad(b1.reshape(1, d_ff).astype(jnp.float32),
                    ((0, 0), (0, d_ff_p - d_ff)))
    b2_2d = jnp.pad(b2.reshape(1, d_model).astype(jnp.float32),
                    ((0, 0), (0, d_model_p - d_model)))
    return (w1_t, b1_2d, w2_t, b2_2d)


def ffn_forward(x, params, *, tm=None, tff=None,
                max_resident_weight_bytes=None, interpret=False):
    """relu(x @ w1.T + b1) @ w2.T + b2 with params from ffn_prepare().

    x: [..., d_model] (any leading dims; flattened to rows internally).
    """
    cfg = _tpu_defaults()
    if tm is None:
        tm = cfg["tm"]
    if tff is None:
        tff = cfg["tff"]
    if max_resident_weight_bytes is None:
        max_resident_weight_bytes = cfg["resident_budget"]
    vmem_cap = cfg["vmem_cap"]
    cores = cfg["cores"]

    w1_t, b1_2d, w2_t, b2_2d = params
    d_model_p, d_ff_p = w1_t.shape
    lead = x.shape[:-1]
    d_model = x.shape[-1]
    M = 1
    for s in lead:
        M *= s

    out_dtype = x.dtype
    dt = w1_t.dtype
    in_it = jnp.dtype(dt).itemsize
    out_it = jnp.dtype(out_dtype).itemsize
    f32_out = jnp.dtype(out_dtype) == jnp.dtype(jnp.float32)

    # bf16 packs two rows per sublane -> round row tiles to 16, else 8.
    row_align = 16 if (in_it < 4 or out_it < 4) else 8

    x2d = x.reshape(M, d_model).astype(dt)

    # --- row tile -------------------------------------------------------------
    tm = max(row_align, _round_up(tm, row_align))
    tm_eff = min(tm, _round_up(M, row_align))
    # Give every TensorCore a row tile (v7x has 2 TCs sharing the grid).
    while (cores > 1 and M >= cores * row_align and tm_eff > row_align
           and _round_up(M, tm_eff) // tm_eff < cores):
        tm_eff = max(row_align, _round_up(tm_eff // 2, row_align))

    # --- d_ff tile (must divide d_ff_p, which is a multiple of 128) ------------
    tff = max(128, _round_up(tff, 128))
    tff_eff = min(tff, d_ff_p)
    while d_ff_p % tff_eff:
        tff_eff -= 128

    # --- fast path eligibility: whole padded W1+W2 resident in VMEM ------------
    weights_bytes = 2 * d_model_p * d_ff_p * in_it
    fused = weights_bytes <= max_resident_weight_bytes

    def ws_bytes(tm_b, fused_b):
        x_b = tm_b * d_model_p * in_it
        o_b = tm_b * d_model_p * out_it
        if fused_b:
            w_b = weights_bytes
            bias_b = (d_ff_p + d_model_p) * 4
            return 2 * (x_b + o_b + w_b + bias_b)
        w_b = 2 * tff_eff * d_model_p * in_it
        bias_b = (tff_eff + d_model_p) * 4
        acc_b = 0 if f32_out else tm_b * d_model_p * 4
        return 2 * (x_b + o_b + w_b + bias_b) + acc_b

    # Shrink the row tile until the double-buffered working set fits VMEM.
    while tm_eff > row_align and ws_bytes(tm_eff, fused) > vmem_cap:
        tm_eff = max(row_align, _round_up(tm_eff // 2, row_align))
    if fused and ws_bytes(tm_eff, fused) > vmem_cap:
        fused = False  # resident weights don't fit after all -> stream d_ff chunks
        while tm_eff > row_align and ws_bytes(tm_eff, fused) > vmem_cap:
            tm_eff = max(row_align, _round_up(tm_eff // 2, row_align))

    M_p = _round_up(M, tm_eff)
    if M_p != M or d_model_p != d_model:
        x2d = jnp.pad(x2d, ((0, M_p - M), (0, d_model_p - d_model)))
    n_row = M_p // tm_eff

    vmem_limit = int(min(vmem_cap,
                         max(32 << 20, ws_bytes(tm_eff, fused) * 5 // 4 + (2 << 20))))

    if fused:
        grid = (n_row,)
        kernel = _ffn_kernel_fused
        in_specs = [
            pl.BlockSpec((tm_eff, d_model_p), lambda i: (i, 0)),
            # Constant block index -> W1/W2/biases DMA'd from HBM exactly once.
            pl.BlockSpec((d_model_p, d_ff_p), lambda i: (0, 0)),
            pl.BlockSpec((1, d_ff_p), lambda i: (0, 0)),
            pl.BlockSpec((d_ff_p, d_model_p), lambda i: (0, 0)),
            pl.BlockSpec((1, d_model_p), lambda i: (0, 0)),
        ]
        out_specs = pl.BlockSpec((tm_eff, d_model_p), lambda i: (i, 0))
        scratch_shapes = []
        dim_sem = ("parallel",)
        weight_streams = 1
    else:
        grid = (n_row, d_ff_p // tff_eff)
        kernel = _ffn_kernel_kacc_f32 if f32_out else _ffn_kernel_kacc_scratch
        in_specs = [
            pl.BlockSpec((tm_eff, d_model_p), lambda i, k: (i, 0)),
            pl.BlockSpec((d_model_p, tff_eff), lambda i, k: (0, k)),
            pl.BlockSpec((1, tff_eff), lambda i, k: (0, k)),
            pl.BlockSpec((tff_eff, d_model_p), lambda i, k: (k, 0)),
            pl.BlockSpec((1, d_model_p), lambda i, k: (0, 0)),
        ]
        out_specs = pl.BlockSpec((tm_eff, d_model_p), lambda i, k: (i, 0))
        scratch_shapes = ([] if f32_out
                          else [pltpu.VMEM((tm_eff, d_model_p), jnp.float32)])
        dim_sem = ("parallel", "arbitrary")
        weight_streams = n_row  # W1/W2 re-streamed once per row tile

    cost = pl.CostEstimate(
        flops=4 * M_p * d_model_p * d_ff_p,
        transcendentals=0,
        bytes_accessed=(M_p * d_model_p * in_it
                        + weight_streams * 2 * d_model_p * d_ff_p * in_it
                        + 4 * (d_ff_p + d_model_p)
                        + M_p * d_model_p * out_it),
    )

    out2d = pl.pallas_call(
        kernel,
        out_shape=jax.ShapeDtypeStruct((M_p, d_model_p), out_dtype),
        grid_spec=pltpu.PrefetchScalarGridSpec(
            num_scalar_prefetch=0,
            grid=grid,
            in_specs=in_specs,
            out_specs=out_specs,
            scratch_shapes=scratch_shapes,
        ),
        compiler_params=pltpu.CompilerParams(
            dimension_semantics=dim_sem,
            vmem_limit_bytes=vmem_limit,
        ),
        cost_estimate=cost,
        interpret=interpret,
    )(x2d, w1_t, b1_2d, w2_t, b2_2d)

    return out2d[:M, :d_model].reshape(lead + (d_model,))


def ffn(x, w1, b1, w2, b2, *, compute_dtype=jnp.bfloat16, **kw):
    """Convenience one-shot: prepare + forward (prefer hoisting ffn_prepare)."""
    return ffn_forward(x, ffn_prepare(w1, b1, w2, b2, compute_dtype=compute_dtype), **kw)


# --------------------------------------------------------------------------- #
# Demo / correctness check
# --------------------------------------------------------------------------- #
if __name__ == "__main__":
    key = jax.random.PRNGKey(0)

    def init_params(k, d_model, d_ff):
        kw1, kb1, kw2, kb2 = jax.random.split(k, 4)
        bound1 = 1.0 / jnp.sqrt(jnp.float32(d_model))
        w1 = jax.random.uniform(kw1, (d_ff, d_model), jnp.float32, -bound1, bound1)
        b1 = jax.random.uniform(kb1, (d_ff,), jnp.float32, -bound1, bound1)
        bound2 = 1.0 / jnp.sqrt(jnp.float32(d_ff))
        w2 = jax.random.uniform(kw2, (d_model, d_ff), jnp.float32, -bound2, bound2)
        b2 = jax.random.uniform(kb2, (d_model,), jnp.float32, -bound2, bound2)
        return w1, b1, w2, b2

    def reference(x, w1, b1, w2, b2):
        h = jnp.maximum(
            jnp.einsum("bsd,fd->bsf", x.astype(jnp.float32), w1,
                       precision=lax.Precision.HIGHEST) + b1, 0.0)
        return jnp.einsum("bsf,df->bsd", h, w2,
                          precision=lax.Precision.HIGHEST) + b2

    # --- 1) tiny shapes, f32 compute, fused fast path (tight tolerance) -------
    kx, kp = jax.random.split(key)
    B, S, d_model, d_ff = 2, 8, 32, 64
    x = jax.random.normal(kx, (B, S, d_model), dtype=jnp.float32)
    w1, b1, w2, b2 = init_params(kp, d_model, d_ff)
    params_f32 = ffn_prepare(w1, b1, w2, b2, compute_dtype=jnp.float32)
    fwd_f32 = jax.jit(ffn_forward)
    y = jax.block_until_ready(fwd_f32(x, params_f32))
    y_ref = reference(x, w1, b1, w2, b2)
    assert y.shape == (B, S, d_model)
    assert jnp.allclose(y, y_ref, atol=1e-4, rtol=1e-4)

    # --- 2) MXU-friendly shapes, bf16 compute (default) ------------------------
    kx2, kp2 = jax.random.split(kp)
    B, S, d_model, d_ff = 2, 128, 256, 512
    x = jax.random.normal(kx2, (B, S, d_model), dtype=jnp.float32)
    w1, b1, w2, b2 = init_params(kp2, d_model, d_ff)
    params_bf16 = ffn_prepare(w1, b1, w2, b2)     # bf16 weights, prepared once
    y_ref = reference(x, w1, b1, w2, b2)

    # 2a) fused fast path (weights resident in VMEM).
    fwd_fast = jax.jit(functools.partial(ffn_forward, tm=256))
    y_fast = jax.block_until_ready(fwd_fast(x, params_bf16))
    assert y_fast.shape == (B, S, d_model)
    assert jnp.allclose(y_fast, y_ref, atol=5e-2, rtol=5e-2)

    # 2b) forced streaming path (d_ff tiled, accumulate into f32 output block).
    fwd_stream = jax.jit(functools.partial(
        ffn_forward, tm=128, tff=256, max_resident_weight_bytes=0))
    y_stream = jax.block_until_ready(fwd_stream(x, params_bf16))
    assert jnp.allclose(y_stream, y_ref, atol=5e-2, rtol=5e-2)

    # --- 3) bf16 activations/output, streaming path with scratch accumulator ---
    x_bf16 = x.astype(jnp.bfloat16)
    y_bf16 = jax.block_until_ready(fwd_stream(x_bf16, params_bf16))
    assert y_bf16.dtype == jnp.bfloat16
    assert jnp.allclose(y_bf16.astype(jnp.float32),
                        reference(x_bf16, w1, b1, w2, b2),
                        atol=8e-2, rtol=8e-2)

    print("KERNEL_OK")
</pallas_src>

<mosaic_0001>
module attributes {stable_mosaic.version = 11 : i64} {
  func.func @_ffn_kernel_fused(%arg0: i32, %arg1: memref<16x128xf32, #tpu.memory_space<vmem>>, %arg2: memref<128x128xf32, #tpu.memory_space<vmem>>, %arg3: memref<1x128xf32, #tpu.memory_space<vmem>>, %arg4: memref<128x128xf32, #tpu.memory_space<vmem>>, %arg5: memref<1x128xf32, #tpu.memory_space<vmem>>, %arg6: memref<16x128xf32, #tpu.memory_space<vmem>>) attributes {dimension_semantics = [#tpu.dimension_semantics<parallel>], iteration_bounds = array<i64: 1>, scalar_prefetch = 0 : i64, scratch_operands = 0 : i64, tpu.core_type = #tpu.core_type<tc>, window_params = [{transform_indices = @transform_0, window_bounds = array<i64: 16, 128>}, {pipeline_mode = #tpu.pipeline_mode<synchronous>, transform_indices = @transform_1, window_bounds = array<i64: 128, 128>}, {pipeline_mode = #tpu.pipeline_mode<synchronous>, transform_indices = @transform_2, window_bounds = array<i64: 1, 128>}, {pipeline_mode = #tpu.pipeline_mode<synchronous>, transform_indices = @transform_3, window_bounds = array<i64: 128, 128>}, {pipeline_mode = #tpu.pipeline_mode<synchronous>, transform_indices = @transform_4, window_bounds = array<i64: 1, 128>}, {transform_indices = @transform_5, window_bounds = array<i64: 16, 128>}]} {
    %c0 = arith.constant 0 : index
    %c0_0 = arith.constant 0 : index
    %0 = vector.load %arg1[%c0, %c0_0] : memref<16x128xf32, #tpu.memory_space<vmem>>, vector<16x128xf32>
    %c0_1 = arith.constant 0 : index
    %c0_2 = arith.constant 0 : index
    %1 = vector.load %arg2[%c0_1, %c0_2] : memref<128x128xf32, #tpu.memory_space<vmem>>, vector<128x128xf32>
    %cst = arith.constant dense<0.000000e+00> : vector<16x128xf32>
    %2 = tpu.matmul %0, %1, %cst {dimension_numbers = #tpu.dot_dimension_numbers<[1], [0], [0], [1], [0, 0, 1, 1], [], []>} : vector<16x128xf32>, vector<128x128xf32>, vector<16x128xf32> -> vector<16x128xf32>
    %c0_3 = arith.constant 0 : index
    %c0_4 = arith.constant 0 : index
    %3 = vector.load %arg3[%c0_3, %c0_4] : memref<1x128xf32, #tpu.memory_space<vmem>>, vector<1x128xf32>
    %4 = vector.broadcast %3 : vector<1x128xf32> to vector<16x128xf32>
    %5 = arith.addf %2, %4 : vector<16x128xf32>
    %cst_5 = arith.constant 0.000000e+00 : f32
    %6 = vector.broadcast %cst_5 : f32 to vector<16x128xf32>
    %7 = arith.maximumf %5, %6 : vector<16x128xf32>
    %c0_6 = arith.constant 0 : index
    %c0_7 = arith.constant 0 : index
    %8 = vector.load %arg4[%c0_6, %c0_7] : memref<128x128xf32, #tpu.memory_space<vmem>>, vector<128x128xf32>
    %cst_8 = arith.constant dense<0.000000e+00> : vector<16x128xf32>
    %9 = tpu.matmul %7, %8, %cst_8 {dimension_numbers = #tpu.dot_dimension_numbers<[1], [0], [0], [1], [0, 0, 1, 1], [], []>} : vector<16x128xf32>, vector<128x128xf32>, vector<16x128xf32> -> vector<16x128xf32>
    %c0_9 = arith.constant 0 : index
    %c0_10 = arith.constant 0 : index
    %10 = vector.load %arg5[%c0_9, %c0_10] : memref<1x128xf32, #tpu.memory_space<vmem>>, vector<1x128xf32>
    %11 = vector.broadcast %10 : vector<1x128xf32> to vector<16x128xf32>
    %12 = arith.addf %9, %11 : vector<16x128xf32>
    %c0_11 = arith.constant 0 : index
    %c0_12 = arith.constant 0 : index
    %13 = vector.load %arg6[%c0_11, %c0_12] : memref<16x128xf32, #tpu.memory_space<vmem>>, vector<16x128xf32>
    tpu.vector_store %arg6[%c0_11, %c0_12], %12 {strides = array<i32>} : memref<16x128xf32, #tpu.memory_space<vmem>>, vector<16x128xf32>,
    return
  }
  func.func @transform_0(%arg0: i32) -> (i32, i32) {
    %c0_i32 = arith.constant 0 : i32
    %c0_i32_0 = arith.constant 0 : i32
    return %arg0, %c0_i32 : i32, i32
  }
  func.func @transform_1(%arg0: i32) -> (i32, i32) {
    %c0_i32 = arith.constant 0 : i32
    %c0_i32_0 = arith.constant 0 : i32
    %c0_i32_1 = arith.constant 0 : i32
    return %c0_i32, %c0_i32_0 : i32, i32
  }
  func.func @transform_2(%arg0: i32) -> (i32, i32) {
    %c0_i32 = arith.constant 0 : i32
    %c0_i32_0 = arith.constant 0 : i32
    %c0_i32_1 = arith.constant 0 : i32
    return %c0_i32, %c0_i32_0 : i32, i32
  }
  func.func @transform_3(%arg0: i32) -> (i32, i32) {
    %c0_i32 = arith.constant 0 : i32
    %c0_i32_0 = arith.constant 0 : i32
    %c0_i32_1 = arith.constant 0 : i32
    return %c0_i32, %c0_i32_0 : i32, i32
  }
  func.func @transform_4(%arg0: i32) -> (i32, i32) {
    %c0_i32 = arith.constant 0 : i32
    %c0_i32_0 = arith.constant 0 : i32
    %c0_i32_1 = arith.constant 0 : i32
    return %c0_i32, %c0_i32_0 : i32, i32
  }
  func.func @transform_5(%arg0: i32) -> (i32, i32) {
    %c0_i32 = arith.constant 0 : i32
    %c0_i32_0 = arith.constant 0 : i32
    return %arg0, %c0_i32 : i32, i32
  }
}

</mosaic_0001>

<llo_original>
// kernel: ffn_forward.1
$region0: #{ffn_forward.1}
  #allocation0 [shape = 'u32[]', space=smem, size = 0x4, offset = 0x4, fixed_abs, tag = 'smem constant byte address 0x4 - core index']
  #allocation1 [shape = 'u32[72,128]{1,0:T(1,128)}', space=vmem, size = 0x9000, scoped, tag = 'internal scratch']
  %s0 = inlined_call_operand.vmem [shape: f32[16,128], index: 0, kind: input, shape index: {}]
  %s1 = inlined_call_operand.hbm [shape: f32[128,128], index: 1, kind: input, shape index: {}]
  %s2 = inlined_call_operand.vmem [shape: f32[1,128], index: 2, kind: input, shape index: {}]
  %s3 = inlined_call_operand.hbm [shape: f32[128,128], index: 3, kind: input, shape index: {}]
  %s4 = inlined_call_operand.vmem [shape: f32[1,128], index: 4, kind: input, shape index: {}]
  %s5 = inlined_call_operand.vmem [shape: f32[16,128], index: 5, kind: output, shape index: {}]
  %s6 = sld [smem:[#allocation0]]
  $region38: #{ffn_forward.1} parent=0
    _
  %s8 = ssub.s32 1, %s6
  %s9 = scalar_select 0, %s8, %s6
  $region1: #{ffn_forward.1} parent=0
    #allocation2 [shape = 'u8[65536]{0}', space=vmem, size = 0x10000, scoped, tag = 'input window, operand 1, single buffered']
    #allocation3 [shape = 's32[1]{0}', space=sflag, size = 0x4, scoped, tag = 'scoped memory for ffn_forward.1']
    #allocation4 [shape = 'u8[65536]{0}', space=vmem, size = 0x10000, scoped, tag = 'input window, operand 3, single buffered']
    #allocation5 [shape = 's32[1]{0}', space=sflag, size = 0x4, scoped, tag = 'scoped memory for ffn_forward.1']
    %10 = vsyncpa [#allocation3], 0
    %11 = vsyncpa [#allocation5], 0
    // Predicated region
    $region2: #{ffn_forward.1} parent=1 // pred_check
      _
    $region3: #{ffn_forward.1} parent=1 // pred_check_branch
      %13 = sbr.rel (0) target = $region5
    $region4: #{ffn_forward.1} parent=1 // pred_region
      _
    $region5: #{ffn_forward.1} parent=1 // pred_fallthru
      _
    // Predicated region
    $region6: #{ffn_forward.1} parent=1 // pred_check
      _
    $region7: #{ffn_forward.1} parent=1 // pred_check_branch
      %15 = sbr.rel (0) target = $region9
    $region8: #{ffn_forward.1} parent=1 // pred_region
      %17 = vsyncadd [#allocation3], 0
      %s18 = sshll.u32 %s1, 4
      %s19 = int_to_ptr.hbm [resolvable:$true] %s18
      %s20 = sshll.u32 [#allocation2], 4
      %s21 = int_to_ptr.vmem [resolvable:$true] %s20
      %26 = dma.hbm_to_vmem [thread:$0]  %s19, 2048, %s21, [#allocation3], 128, 128, 8
    $region9: #{ffn_forward.1} parent=1 // pred_fallthru
      _
    // Predicated region
    $region10: #{ffn_forward.1} parent=1 // pred_check
      _
    $region11: #{ffn_forward.1} parent=1 // pred_check_branch
      %28 = sbr.rel (0) target = $region13
    $region12: #{ffn_forward.1} parent=1 // pred_region
      _
    $region13: #{ffn_forward.1} parent=1 // pred_fallthru
      _
    // Predicated region
    $region14: #{ffn_forward.1} parent=1 // pred_check
      _
    $region15: #{ffn_forward.1} parent=1 // pred_check_branch
      %30 = sbr.rel (0) target = $region17
    $region16: #{ffn_forward.1} parent=1 // pred_region
      %32 = vsyncadd [#allocation5], 0
      %s33 = sshll.u32 %s3, 4
      %s34 = int_to_ptr.hbm [resolvable:$true] %s33
      %s35 = sshll.u32 [#allocation4], 4
      %s36 = int_to_ptr.vmem [resolvable:$true] %s35
      %41 = dma.hbm_to_vmem [thread:$0]  %s34, 2048, %s36, [#allocation5], 128, 128, 8
    $region17: #{ffn_forward.1} parent=1 // pred_fallthru
      _
    // Predicated region
    $region18: #{ffn_forward.1} parent=1 // pred_check
      _
    $region19: #{ffn_forward.1} parent=1 // pred_check_branch
      %43 = sbr.rel (0) target = $region21
    $region20: #{ffn_forward.1} parent=1 // pred_region
      _
    $region21: #{ffn_forward.1} parent=1 // pred_fallthru
      _
    // Predicated region
    $region22: #{ffn_forward.1} parent=1 // pred_check
      _
    $region23: #{ffn_forward.1} parent=1 // pred_check_branch
      %45 = sbr.rel (0) target = $region25
    $region24: #{ffn_forward.1} parent=1 // pred_region
      %47 = dma.done [#allocation3], 2048
    $region25: #{ffn_forward.1} parent=1 // pred_fallthru
      _
    // Predicated region
    $region26: #{ffn_forward.1} parent=1 // pred_check
      _
    $region27: #{ffn_forward.1} parent=1 // pred_check_branch
      %49 = sbr.rel (0) target = $region29
    $region28: #{ffn_forward.1} parent=1 // pred_region
      %51 = dma.done [#allocation5], 2048
    $region29: #{ffn_forward.1} parent=1 // pred_fallthru
      _
    %v52 = vld [vmem:[%s0] sm:$0xff]
    %v53 = vld [vmem:[%s0 + $0x8] sm:$0xff]
    %v54 = vld [vmem:[#allocation2] sm:$0xff]
    %v55 = vld [vmem:[#allocation2 + $0x8] sm:$0xff]
    %v56 = vld [vmem:[#allocation2 + $0x10] sm:$0xff]
    %v57 = vld [vmem:[#allocation2 + $0x18] sm:$0xff]
    %v58 = vld [vmem:[#allocation2 + $0x20] sm:$0xff]
    %v59 = vld [vmem:[#allocation2 + $0x28] sm:$0xff]
    %v60 = vld [vmem:[#allocation2 + $0x30] sm:$0xff]
    %v61 = vld [vmem:[#allocation2 + $0x38] sm:$0xff]
    %v62 = vld [vmem:[#allocation2 + $0x40] sm:$0xff]
    %v63 = vld [vmem:[#allocation2 + $0x48] sm:$0xff]
    %v64 = vld [vmem:[#allocation2 + $0x50] sm:$0xff]
    %v65 = vld [vmem:[#allocation2 + $0x58] sm:$0xff]
    %v66 = vld [vmem:[#allocation2 + $0x60] sm:$0xff]
    %v67 = vld [vmem:[#allocation2 + $0x68] sm:$0xff]
    %v68 = vld [vmem:[#allocation2 + $0x70] sm:$0xff]
    %v69 = vld [vmem:[#allocation2 + $0x78] sm:$0xff]
    %v70 = vld [vmem:[%s2] sm:$0x1]
    %v72 = vperm.slane %v70, 0
    %74 = vmatpush.msra.mxu0 %v69
    %75 = vmatpush.msra.mxu0 %v68
    %76 = vmatpush.msra.mxu0 %v67
    %77 = vmatpush.msra.mxu0 %v66
    %78 = vmatpush.msra.mxu0 %v65
    %79 = vmatpush.msra.mxu0 %v64
    %80 = vmatpush.msra.mxu0 %v63
    %81 = vmatpush.msra.mxu0 %v62
    %82 = vmatpush.msra.mxu0 %v61
    %83 = vmatpush.msra.mxu0 %v60
    %84 = vmatpush.msra.mxu0 %v59
    %85 = vmatpush.msra.mxu0 %v58
    %86 = vmatpush.msra.mxu0 %v57
    %87 = vmatpush.msra.mxu0 %v56
    %88 = vmatpush.msra.mxu0 %v55
    %89 = vmatpush.msra.mxu0 %v54
    %90 = vmatmul.f32.gmra.mxu0 %v52
    %v91 = vpop.f32.mrf.mxu0
    %v92 = vadd.f32 %v72, %v91
    %93 = vmatmul.f32.gmra.mxu0 %v53
    %v94 = vpop.f32.mrf.mxu0
    %v95 = vadd.f32 %v72, %v94
    %96 = vdwg.mxu0
    %v97 = vmax.f32 %v92, 0.0
    %v98 = vmax.f32 %v95, 0.0
    %v99 = vld [vmem:[#allocation4] sm:$0xff]
    %v100 = vld [vmem:[#allocation4 + $0x8] sm:$0xff]
    %v101 = vld [vmem:[#allocation4 + $0x10] sm:$0xff]
    %v102 = vld [vmem:[#allocation4 + $0x18] sm:$0xff]
    %v103 = vld [vmem:[#allocation4 + $0x20] sm:$0xff]
    %v104 = vld [vmem:[#allocation4 + $0x28] sm:$0xff]
    %v105 = vld [vmem:[#allocation4 + $0x30] sm:$0xff]
    %v106 = vld [vmem:[#allocation4 + $0x38] sm:$0xff]
    %v107 = vld [vmem:[#allocation4 + $0x40] sm:$0xff]
    %v108 = vld [vmem:[#allocation4 + $0x48] sm:$0xff]
    %v109 = vld [vmem:[#allocation4 + $0x50] sm:$0xff]
    %v110 = vld [vmem:[#allocation4 + $0x58] sm:$0xff]
    %v111 = vld [vmem:[#allocation4 + $0x60] sm:$0xff]
    %v112 = vld [vmem:[#allocation4 + $0x68] sm:$0xff]
    %v113 = vld [vmem:[#allocation4 + $0x70] sm:$0xff]
    %v114 = vld [vmem:[#allocation4 + $0x78] sm:$0xff]
    %v115 = vld [vmem:[%s4] sm:$0x1]
    %v117 = vperm.slane %v115, 0
    %119 = vmatpush.msra.mxu0 %v114
    %120 = vmatpush.msra.mxu0 %v113
    %121 = vmatpush.msra.mxu0 %v112
    %122 = vmatpush.msra.mxu0 %v111
    %123 = vmatpush.msra.mxu0 %v110
    %124 = vmatpush.msra.mxu0 %v109
    %125 = vmatpush.msra.mxu0 %v108
    %126 = vmatpush.msra.mxu0 %v107
    %127 = vmatpush.msra.mxu0 %v106
    %128 = vmatpush.msra.mxu0 %v105
    %129 = vmatpush.msra.mxu0 %v104
    %130 = vmatpush.msra.mxu0 %v103
    %131 = vmatpush.msra.mxu0 %v102
    %132 = vmatpush.msra.mxu0 %v101
    %133 = vmatpush.msra.mxu0 %v100
    %134 = vmatpush.msra.mxu0 %v99
    %135 = vmatmul.f32.gmra.mxu0 %v97
    %v136 = vpop.f32.mrf.mxu0
    %v137 = vadd.f32 %v117, %v136
    %138 = vmatmul.f32.gmra.mxu0 %v98
    %v139 = vpop.f32.mrf.mxu0
    %v140 = vadd.f32 %v117, %v139
    %141 = vdwg.mxu0
    %142 = vst [vmem:[%s5] sm:$0xff] %v137
    %143 = vst [vmem:[%s5 + $0x8] sm:$0xff] %v140
    // Predicated region
    $region30: #{ffn_forward.1} parent=1 // pred_check
      _
    $region31: #{ffn_forward.1} parent=1 // pred_check_branch
      %145 = sbr.rel (0) target = $region33
    $region32: #{ffn_forward.1} parent=1 // pred_region
      _
    $region33: #{ffn_forward.1} parent=1 // pred_fallthru
      _
    // Predicated region
    $region34: #{ffn_forward.1} parent=1 // pred_check
      _
    $region35: #{ffn_forward.1} parent=1 // pred_check_branch
      %147 = sbr.rel (0) target = $region37
    $region36: #{ffn_forward.1} parent=1 // pred_region
      _
    $region37: #{ffn_forward.1} parent=1 // pred_fallthru
      _
    %148 = vsyncpa [#allocation3], 1
    %149 = vsyncpa [#allocation5], 1

</llo_original>
